<compile_context>
chip_gen: v7x
topology: tpu7x:2x2x1
jax: 0.10.0
libtpu: 0.0.40
codegen_flags: <defaults>
</compile_context>

<pallas_src>
import jax
import jax.numpy as jnp
from jax import lax
from jax.experimental import pallas as pl
from jax.experimental.pallas import tpu as pltpu

B, N, Dc = 2, 16, 32      # batch (pairs), drug-graph nodes, node-feature dim
L, Dp = 32, 64            # protein sequence length, protein token-embed dim
E = 128                   # shared embedding dim (proxy for GIN emb_dim=300)
H = 128                   # interaction-head hidden dim
VOCAB = 26                # amino-acid vocab size
VOCAB_PAD = 32            # padded vocab (sublane multiple) for the one-hot matmul

BN = B * N                # 32
BL = B * L                # 64

# ---- packed-slab static row offsets ----
SLAB_W = max(BN, Dc, VOCAB_PAD)          # 32  (data-slab lane width; all blocks equal here)
ROW_ADJ, ROW_X, ROW_OH = 0, BN, 2 * BN   # data slab: [adj+I | node feats | one-hot]
DATA_ROWS = 2 * BN + BL                  # 128

ROW_WG = 0                               # weight slab: [wg | emb_wp | w1 | b1 | w2]
ROW_EMB = ROW_WG + Dc                    # 32
ROW_W1 = ROW_EMB + VOCAB_PAD             # 64
ROW_B1 = ROW_W1 + 2 * E                  # 320
ROW_W2 = ROW_B1 + 8                      # 328  (b1/w2 each padded to an 8-row chunk)
WSLAB_ROWS = ROW_W2 + 8                  # 336

OUT_ROWS = 8                             # pad batch rows up to a full sublane tile


def _dti_kernel(data_ref, wslab_ref, b2_ref, out_ref):
    # ---- static carves of the two packed slabs (zero runtime cost) ----
    A = data_ref[ROW_ADJ:ROW_ADJ + BN, 0:BN]           # (BN, BN) block-diag adj + I
    X = data_ref[ROW_X:ROW_X + BN, 0:Dc]                # (BN, Dc) node features
    onehot = data_ref[ROW_OH:ROW_OH + BL, 0:VOCAB_PAD]  # (BL, Vp) protein one-hot

    wg = wslab_ref[ROW_WG:ROW_WG + Dc, :]                # (Dc, E)
    emb_wp = wslab_ref[ROW_EMB:ROW_EMB + VOCAB_PAD, :]   # (Vp, E)  fused emb @ wp
    w1 = wslab_ref[ROW_W1:ROW_W1 + 2 * E, :]             # (2E, H)
    b1 = wslab_ref[ROW_B1:ROW_B1 + 1, :]                 # (1, H)
    w2 = wslab_ref[ROW_W2:ROW_W2 + 1, :]                 # (1, H)

    # --- chem branch: GIN-style aggregation (self-loop folded into A) + linear + ReLU ---
    msg = jnp.dot(A, X, preferred_element_type=jnp.float32)                 # (BN, Dc)
    hd_nodes = jnp.maximum(
        jnp.dot(msg, wg, preferred_element_type=jnp.float32), 0.0)          # (BN, E)
    hd = jnp.mean(hd_nodes.reshape(B, N, E), axis=1)                        # (B, E) mean pool

    # --- protein branch: fused (embedding @ wp) lookup via one-hot matmul + ReLU ---
    hp_tok = jnp.maximum(
        jnp.dot(onehot, emb_wp, preferred_element_type=jnp.float32), 0.0)   # (BL, E)
    hp = jnp.mean(hp_tok.reshape(B, L, E), axis=1)                          # (B, E) mean pool

    # --- interaction head: concat (free lane append) -> single K=2E dot -> scalar logit ---
    z = jnp.concatenate([hd, hp], axis=-1)                                  # (B, 2E)
    h1 = jnp.maximum(
        jnp.dot(z, w1, preferred_element_type=jnp.float32) + b1, 0.0)       # (B, H)
    logit = jnp.sum(h1 * w2, axis=-1, keepdims=True) + b2_ref[0]            # (B, 1)

    # full (8, 128) unmasked store; wrapper slices [:B, 0:1]
    out_ref[...] = jnp.concatenate(
        [jnp.broadcast_to(logit, (B, 128)),
         jnp.zeros((OUT_ROWS - B, 128), jnp.float32)], axis=0)


def dti_forward(adj, node_feats, prot_tokens, emb_table, params):
    wg, wp, w1, b1, w2, b2 = params

    # ---- wrapper-side re-layout (static shapes, negligible cost) ----
    # block-diagonal adjacency with self-loops folded in
    adj_sl = adj + jnp.eye(N, dtype=adj.dtype)[None]                 # (B, N, N)
    adj_bd = jnp.einsum('bc,bij->bicj', jnp.eye(B, dtype=adj.dtype),
                        adj_sl).reshape(BN, BN)                      # (BN, BN)
    x_flat = node_feats.reshape(BN, Dc)

    # protein one-hot built here (no raw int32 DMA); out-of-vocab rows stay zero
    tok = prot_tokens.reshape(BL).astype(jnp.int32)
    onehot = (tok[:, None] == jnp.arange(VOCAB_PAD, dtype=jnp.int32)[None, :]
              ).astype(jnp.float32)                                  # (BL, Vp)

    # data slab: [adj+I | x | one-hot], one lane-width for all blocks
    data = jnp.zeros((DATA_ROWS, SLAB_W), jnp.float32)
    data = data.at[ROW_ADJ:ROW_ADJ + BN, 0:BN].set(adj_bd)
    data = data.at[ROW_X:ROW_X + BN, 0:Dc].set(x_flat)
    data = data.at[ROW_OH:ROW_OH + BL, 0:VOCAB_PAD].set(onehot)

    # fused protein projection: emb_wp = emb_table @ wp (exact reassociation,
    # params-only). HIGHEST precision keeps the 1e-4 reference tolerance.
    emb_wp = jnp.zeros((VOCAB_PAD, E), jnp.float32).at[:VOCAB].set(
        jnp.dot(emb_table, wp, precision=lax.Precision.HIGHEST))

    # weight slab: [wg | emb_wp | w1 | b1 | w2], sublane-stacked, lane width E
    wslab = jnp.zeros((WSLAB_ROWS, E), jnp.float32)
    wslab = wslab.at[ROW_WG:ROW_WG + Dc].set(wg)
    wslab = wslab.at[ROW_EMB:ROW_EMB + VOCAB_PAD].set(emb_wp)
    wslab = wslab.at[ROW_W1:ROW_W1 + 2 * E].set(w1)
    wslab = wslab.at[ROW_B1].set(b1.reshape(E))
    wslab = wslab.at[ROW_W2].set(w2.reshape(E))

    b2_s = b2.reshape(1)                                             # SMEM scalar

    vmem = pl.BlockSpec(memory_space=pltpu.MemorySpace.VMEM)
    smem = pl.BlockSpec(memory_space=pltpu.MemorySpace.SMEM)

    out = pl.pallas_call(
        _dti_kernel,
        out_shape=jax.ShapeDtypeStruct((OUT_ROWS, 128), jnp.float32),
        in_specs=[vmem, vmem, smem],
        out_specs=vmem,
    )(data, wslab, b2_s)
    return out[:B, 0:1]                                              # (B, 1) logits


def _reference(adj, node_feats, prot_emb, params):
    wg, wp, w1, b1, w2, b2 = params
    msg = jnp.einsum('bnm,bmd->bnd', adj, node_feats) + node_feats
    hd = jnp.mean(jnp.maximum(jnp.einsum('bnd,de->bne', msg, wg), 0.0), axis=1)
    hp = jnp.mean(jnp.maximum(jnp.einsum('bld,de->ble', prot_emb, wp), 0.0), axis=1)
    z = jnp.concatenate([hd, hp], axis=-1)
    h1 = jnp.maximum(z @ w1 + b1, 0.0)
    return jnp.sum(h1 * w2, axis=-1, keepdims=True) + b2[0, 0]


if __name__ == "__main__":
    key = jax.random.PRNGKey(0)
    ks = jax.random.split(key, 10)

    # ---- deterministic parameters (proxy for model3.load_state_dict) ----
    wg = jax.random.normal(ks[0], (Dc, E), jnp.float32) * 0.05
    wp = jax.random.normal(ks[1], (Dp, E), jnp.float32) * 0.05
    w1 = jax.random.normal(ks[2], (2 * E, H), jnp.float32) * 0.05
    b1 = jax.random.normal(ks[3], (1, H), jnp.float32) * 0.01
    w2 = jax.random.normal(ks[4], (1, H), jnp.float32) * 0.05
    b2 = jax.random.normal(ks[5], (1, 1), jnp.float32) * 0.01
    emb_table = jax.random.normal(ks[6], (VOCAB, Dp), jnp.float32) * 0.1
    params = (wg, wp, w1, b1, w2, b2)

    # ---- deterministic example batch_data ----
    node_feats = jax.random.normal(ks[7], (B, N, Dc), jnp.float32)
    a_rand = jax.random.uniform(ks[8], (B, N, N))
    adj = (a_rand + jnp.swapaxes(a_rand, 1, 2) > 1.0).astype(jnp.float32)
    prot_tokens = jax.random.randint(ks[9], (B, L), 0, VOCAB)

    logits = dti_forward(adj, node_feats, prot_tokens, emb_table, params)
    jax.block_until_ready(logits)

    prot_emb = jnp.take(emb_table, prot_tokens, axis=0)   # reference-side embedding lookup
    ref = _reference(adj, node_feats, prot_emb, params)
    assert logits.shape == (B, 1)
    assert jnp.allclose(logits, ref, atol=1e-4, rtol=1e-4)
    print("KERNEL_OK")
</pallas_src>

<mosaic_0001>
module attributes {stable_mosaic.version = 11 : i64} {
  func.func @_dti_kernel(%arg0: memref<128x32xf32, #tpu.memory_space<vmem>>, %arg1: memref<336x128xf32, #tpu.memory_space<vmem>>, %arg2: memref<1xf32, #tpu.memory_space<smem>>, %arg3: memref<8x128xf32, #tpu.memory_space<vmem>>) attributes {dimension_semantics = [], scalar_prefetch = 0 : i64, scratch_operands = 0 : i64, tpu.core_type = #tpu.core_type<tc>} {
    %c0 = arith.constant 0 : index
    %c0_0 = arith.constant 0 : index
    %0 = vector.load %arg0[%c0, %c0_0] : memref<128x32xf32, #tpu.memory_space<vmem>>, vector<32x32xf32>
    %c32 = arith.constant 32 : index
    %c0_1 = arith.constant 0 : index
    %1 = vector.load %arg0[%c32, %c0_1] : memref<128x32xf32, #tpu.memory_space<vmem>>, vector<32x32xf32>
    %c64 = arith.constant 64 : index
    %c0_2 = arith.constant 0 : index
    %2 = vector.load %arg0[%c64, %c0_2] : memref<128x32xf32, #tpu.memory_space<vmem>>, vector<64x32xf32>
    %c0_3 = arith.constant 0 : index
    %c0_4 = arith.constant 0 : index
    %3 = vector.load %arg1[%c0_3, %c0_4] : memref<336x128xf32, #tpu.memory_space<vmem>>, vector<32x128xf32>
    %c32_5 = arith.constant 32 : index
    %c0_6 = arith.constant 0 : index
    %4 = vector.load %arg1[%c32_5, %c0_6] : memref<336x128xf32, #tpu.memory_space<vmem>>, vector<32x128xf32>
    %c64_7 = arith.constant 64 : index
    %c0_8 = arith.constant 0 : index
    %5 = vector.load %arg1[%c64_7, %c0_8] : memref<336x128xf32, #tpu.memory_space<vmem>>, vector<256x128xf32>
    %c320 = arith.constant 320 : index
    %c0_9 = arith.constant 0 : index
    %6 = vector.load %arg1[%c320, %c0_9] : memref<336x128xf32, #tpu.memory_space<vmem>>, vector<1x128xf32>
    %c328 = arith.constant 328 : index
    %c0_10 = arith.constant 0 : index
    %7 = vector.load %arg1[%c328, %c0_10] : memref<336x128xf32, #tpu.memory_space<vmem>>, vector<1x128xf32>
    %cst = arith.constant dense<0.000000e+00> : vector<32x32xf32>
    %8 = tpu.matmul %0, %1, %cst {dimension_numbers = #tpu.dot_dimension_numbers<[1], [0], [0], [1], [0, 0, 1, 1], [], []>} : vector<32x32xf32>, vector<32x32xf32>, vector<32x32xf32> -> vector<32x32xf32>
    %cst_11 = arith.constant dense<0.000000e+00> : vector<32x128xf32>
    %9 = tpu.matmul %8, %3, %cst_11 {dimension_numbers = #tpu.dot_dimension_numbers<[1], [0], [0], [1], [0, 0, 1, 1], [], []>} : vector<32x32xf32>, vector<32x128xf32>, vector<32x128xf32> -> vector<32x128xf32>
    %cst_12 = arith.constant 0.000000e+00 : f32
    %10 = vector.broadcast %cst_12 : f32 to vector<32x128xf32>
    %11 = arith.maximumf %9, %10 : vector<32x128xf32>
    %12 = vector.shape_cast %11 : vector<32x128xf32> to vector<2x16x128xf32>
    %cst_13 = arith.constant dense<0.000000e+00> : vector<2x128xf32>
    %13 = vector.multi_reduction <add>, %12, %cst_13 [1] : vector<2x16x128xf32> to vector<2x128xf32>
    %cst_14 = arith.constant 1.600000e+01 : f32
    %14 = vector.broadcast %cst_14 : f32 to vector<2x128xf32>
    %15 = arith.divf %13, %14 : vector<2x128xf32>
    %cst_15 = arith.constant dense<0.000000e+00> : vector<64x128xf32>
    %16 = tpu.matmul %2, %4, %cst_15 {dimension_numbers = #tpu.dot_dimension_numbers<[1], [0], [0], [1], [0, 0, 1, 1], [], []>} : vector<64x32xf32>, vector<32x128xf32>, vector<64x128xf32> -> vector<64x128xf32>
    %cst_16 = arith.constant 0.000000e+00 : f32
    %17 = vector.broadcast %cst_16 : f32 to vector<64x128xf32>
    %18 = arith.maximumf %16, %17 : vector<64x128xf32>
    %19 = vector.shape_cast %18 : vector<64x128xf32> to vector<2x32x128xf32>
    %cst_17 = arith.constant dense<0.000000e+00> : vector<2x128xf32>
    %20 = vector.multi_reduction <add>, %19, %cst_17 [1] : vector<2x32x128xf32> to vector<2x128xf32>
    %cst_18 = arith.constant 3.200000e+01 : f32
    %21 = vector.broadcast %cst_18 : f32 to vector<2x128xf32>
    %22 = arith.divf %20, %21 : vector<2x128xf32>
    %23 = tpu.concatenate %15, %22 in 1 : vector<2x128xf32>, vector<2x128xf32> -> vector<2x256xf32>
    %cst_19 = arith.constant dense<0.000000e+00> : vector<2x128xf32>
    %24 = tpu.matmul %23, %5, %cst_19 {dimension_numbers = #tpu.dot_dimension_numbers<[1], [0], [0], [1], [0, 0, 1, 1], [], []>} : vector<2x256xf32>, vector<256x128xf32>, vector<2x128xf32> -> vector<2x128xf32>
    %25 = vector.broadcast %6 : vector<1x128xf32> to vector<2x128xf32>
    %26 = arith.addf %24, %25 : vector<2x128xf32>
    %cst_20 = arith.constant 0.000000e+00 : f32
    %27 = vector.broadcast %cst_20 : f32 to vector<2x128xf32>
    %28 = arith.maximumf %26, %27 : vector<2x128xf32>
    %29 = vector.broadcast %7 : vector<1x128xf32> to vector<2x128xf32>
    %30 = arith.mulf %28, %29 : vector<2x128xf32>
    %cst_21 = arith.constant dense<0.000000e+00> : vector<2xf32>
    %31 = vector.multi_reduction <add>, %30, %cst_21 [1] : vector<2x128xf32> to vector<2xf32>
    %32 = vector.shape_cast %31 : vector<2xf32> to vector<2x1xf32>
    %c0_22 = arith.constant 0 : index
    %33 = memref.load %arg2[%c0_22] : memref<1xf32, #tpu.memory_space<smem>>
    %34 = vector.broadcast %33 : f32 to vector<2x1xf32>
    %35 = arith.addf %32, %34 : vector<2x1xf32>
    %36 = vector.shape_cast %35 : vector<2x1xf32> to vector<2x1xf32>
    %37 = vector.broadcast %36 : vector<2x1xf32> to vector<2x128xf32>
    %cst_23 = arith.constant 0.000000e+00 : f32
    %38 = vector.broadcast %cst_23 : f32 to vector<6x128xf32>
    %39 = tpu.concatenate %37, %38 in 0 : vector<2x128xf32>, vector<6x128xf32> -> vector<8x128xf32>
    %c0_24 = arith.constant 0 : index
    %c0_25 = arith.constant 0 : index
    %40 = vector.load %arg3[%c0_24, %c0_25] : memref<8x128xf32, #tpu.memory_space<vmem>>, vector<8x128xf32>
    tpu.vector_store %arg3[%c0_24, %c0_25], %39 {strides = array<i32>} : memref<8x128xf32, #tpu.memory_space<vmem>>, vector<8x128xf32>,
    return
  }
}

</mosaic_0001>

<llo_original>
// kernel: tpu_custom_call.1
$region0: #{tpu_custom_call.1}
  #allocation0 [shape = 'u32[]', space=smem, size = 0x4, offset = 0x4, fixed_abs, tag = 'smem constant byte address 0x4 - core index']
  #allocation1 [shape = 'u32[144,128]{1,0:T(1,128)}', space=vmem, size = 0x12000, scoped, tag = 'internal scratch']
  #allocation2 [shape = 'f32[1]{0:T(128)S(6)}', space=smem, size = 0x200, scoped, tag = 'scoped memory for tpu_custom_call.1']
  %s0 = inlined_call_operand.vmem [shape: f32[128,32], index: 0, kind: input, shape index: {}]
  %s1 = inlined_call_operand.hbm [shape: f32[336,128], index: 1, kind: input, shape index: {}]
  %s2 = inlined_call_operand.<no memory space> [shape: f32[1], index: 2, kind: input, shape index: {}]
  %s3 = inlined_call_operand.hbm [shape: f32[8,128], index: 3, kind: output, shape index: {}]
  %s4 = sld [smem:[#allocation0]]
  $region26: #{tpu_custom_call.1} parent=0
    _
  %s6 = ssub.s32 1, %s4
  %s7 = scalar_select 0, %s6, %s4
  %8 = sst [smem:[#allocation2]] %s2
  $region1: #{tpu_custom_call.1} parent=0
    #allocation3 [shape = 'u8[172032]{0}', space=vmem, size = 0x2a000, scoped, tag = 'input window, operand 1, single buffered']
    #allocation4 [shape = 's32[1]{0}', space=sflag, size = 0x4, scoped, tag = 'scoped memory for tpu_custom_call.1']
    #allocation5 [shape = 's32[1]{0}', space=sflag, size = 0x4, scoped, tag = 'scoped memory for tpu_custom_call.1']
    #allocation6 [shape = 'u8[4096]{0}', space=vmem, size = 0x1000, scoped, tag = 'output window, operand 0, single buffered']
    %9 = vsyncpa [#allocation4], 0
    %10 = vsyncpa [#allocation5], 0
    // Predicated region
    $region2: #{tpu_custom_call.1} parent=1 // pred_check
      _
    $region3: #{tpu_custom_call.1} parent=1 // pred_check_branch
      %12 = sbr.rel (0) target = $region5
    $region4: #{tpu_custom_call.1} parent=1 // pred_region
      _
    $region5: #{tpu_custom_call.1} parent=1 // pred_fallthru
      _
    // Predicated region
    $region6: #{tpu_custom_call.1} parent=1 // pred_check
      _
    $region7: #{tpu_custom_call.1} parent=1 // pred_check_branch
      %14 = sbr.rel (0) target = $region9
    $region8: #{tpu_custom_call.1} parent=1 // pred_region
      %s16 = ssub.s32 5376, 5376
      %17 = vsyncadd [#allocation4], %s16
      %s18 = sshll.u32 [#allocation3], 4
      %s19 = int_to_ptr.vmem [resolvable:$true] %s18
      %24 = dma.hbm_to_vmem [thread:$0]  %s1, 5376, %s19, [#allocation4], 128, 128, 8
    $region9: #{tpu_custom_call.1} parent=1 // pred_fallthru
      _
    // Predicated region
    $region10: #{tpu_custom_call.1} parent=1 // pred_check
      _
    $region11: #{tpu_custom_call.1} parent=1 // pred_check_branch
      %26 = sbr.rel (0) target = $region13
    $region12: #{tpu_custom_call.1} parent=1 // pred_region
      _
    $region13: #{tpu_custom_call.1} parent=1 // pred_fallthru
      _
    // Predicated region
    $region14: #{tpu_custom_call.1} parent=1 // pred_check
      _
    $region15: #{tpu_custom_call.1} parent=1 // pred_check_branch
      %28 = sbr.rel (0) target = $region17
    $region16: #{tpu_custom_call.1} parent=1 // pred_region
      %29 = dma.done [#allocation4], 5376
    $region17: #{tpu_custom_call.1} parent=1 // pred_fallthru
      _
    %v30 = vld [vmem:[%s0] sm:$0xff]
    %v31 = vld [vmem:[%s0 + $0x8] sm:$0xff]
    %v32 = vld [vmem:[%s0 + $0x10] sm:$0xff]
    %v33 = vld [vmem:[%s0 + $0x18] sm:$0xff]
    %v34 = vld [vmem:[%s0 + $0x20] sm:$0xff]
    %v35 = vld [vmem:[%s0 + $0x28] sm:$0xff]
    %v36 = vld [vmem:[%s0 + $0x30] sm:$0xff]
    %v37 = vld [vmem:[%s0 + $0x38] sm:$0xff]
    %v38 = vld [vmem:[%s0 + $0x40] sm:$0xff]
    %v39 = vld [vmem:[%s0 + $0x48] sm:$0xff]
    %v40 = vld [vmem:[%s0 + $0x50] sm:$0xff]
    %v41 = vld [vmem:[%s0 + $0x58] sm:$0xff]
    %v42 = vld [vmem:[%s0 + $0x60] sm:$0xff]
    %v43 = vld [vmem:[%s0 + $0x68] sm:$0xff]
    %v44 = vld [vmem:[%s0 + $0x70] sm:$0xff]
    %v45 = vld [vmem:[%s0 + $0x78] sm:$0xff]
    %v46 = vld [vmem:[#allocation3] sm:$0xff]
    %v47 = vld [vmem:[#allocation3 + $0x8] sm:$0xff]
    %v48 = vld [vmem:[#allocation3 + $0x10] sm:$0xff]
    %v49 = vld [vmem:[#allocation3 + $0x18] sm:$0xff]
    %v50 = vld [vmem:[#allocation3 + $0x20] sm:$0xff]
    %v51 = vld [vmem:[#allocation3 + $0x28] sm:$0xff]
    %v52 = vld [vmem:[#allocation3 + $0x30] sm:$0xff]
    %v53 = vld [vmem:[#allocation3 + $0x38] sm:$0xff]
    %v54 = vld [vmem:[#allocation3 + $0x40] sm:$0xff]
    %v55 = vld [vmem:[#allocation3 + $0x48] sm:$0xff]
    %v56 = vld [vmem:[#allocation3 + $0x50] sm:$0xff]
    %v57 = vld [vmem:[#allocation3 + $0x58] sm:$0xff]
    %v58 = vld [vmem:[#allocation3 + $0x60] sm:$0xff]
    %v59 = vld [vmem:[#allocation3 + $0x68] sm:$0xff]
    %v60 = vld [vmem:[#allocation3 + $0x70] sm:$0xff]
    %v61 = vld [vmem:[#allocation3 + $0x78] sm:$0xff]
    %v62 = vld [vmem:[#allocation3 + $0x80] sm:$0xff]
    %v63 = vld [vmem:[#allocation3 + $0x88] sm:$0xff]
    %v64 = vld [vmem:[#allocation3 + $0x90] sm:$0xff]
    %v65 = vld [vmem:[#allocation3 + $0x98] sm:$0xff]
    %v66 = vld [vmem:[#allocation3 + $0xa0] sm:$0xff]
    %v67 = vld [vmem:[#allocation3 + $0xa8] sm:$0xff]
    %v68 = vld [vmem:[#allocation3 + $0xb0] sm:$0xff]
    %v69 = vld [vmem:[#allocation3 + $0xb8] sm:$0xff]
    %v70 = vld [vmem:[#allocation3 + $0xc0] sm:$0xff]
    %v71 = vld [vmem:[#allocation3 + $0xc8] sm:$0xff]
    %v72 = vld [vmem:[#allocation3 + $0xd0] sm:$0xff]
    %v73 = vld [vmem:[#allocation3 + $0xd8] sm:$0xff]
    %v74 = vld [vmem:[#allocation3 + $0xe0] sm:$0xff]
    %v75 = vld [vmem:[#allocation3 + $0xe8] sm:$0xff]
    %v76 = vld [vmem:[#allocation3 + $0xf0] sm:$0xff]
    %v77 = vld [vmem:[#allocation3 + $0xf8] sm:$0xff]
    %v78 = vld [vmem:[#allocation3 + $0x100] sm:$0xff]
    %v79 = vld [vmem:[#allocation3 + $0x108] sm:$0xff]
    %v80 = vld [vmem:[#allocation3 + $0x110] sm:$0xff]
    %v81 = vld [vmem:[#allocation3 + $0x118] sm:$0xff]
    %v82 = vld [vmem:[#allocation3 + $0x120] sm:$0xff]
    %v83 = vld [vmem:[#allocation3 + $0x128] sm:$0xff]
    %v84 = vld [vmem:[#allocation3 + $0x130] sm:$0xff]
    %v85 = vld [vmem:[#allocation3 + $0x138] sm:$0xff]
    %v86 = vld [vmem:[#allocation3 + $0x140] sm:$0x1]
    %v87 = vld [vmem:[#allocation3 + $0x148] sm:$0x1]
    %vm88 = vcmask 261120
    %v90 = vsel %vm88, %v30, 0
    %v93 = vsel %vm88, %v31, 0
    %v96 = vsel %vm88, %v32, 0
    %v99 = vsel %vm88, %v33, 0
    %101 = vmatprep.subr.mxu0 0.0
    %102 = vmatpush1.msra.mxu0 %v34
    %103 = vmatprep.subr.mxu0 0.0
    %104 = vmatpush1.msra.mxu0 %v35
    %105 = vmatprep.subr.mxu0 0.0
    %106 = vmatpush1.msra.mxu0 %v36
    %107 = vmatprep.subr.mxu0 0.0
    %108 = vmatpush1.msra.mxu0 %v37
    %109 = vmatprep.subr.mxu0 0.0
    %110 = vmatpush1.msra.mxu0 0.0
    %111 = vmatprep.subr.mxu0 0.0
    %112 = vmatpush1.msra.mxu0 0.0
    %113 = vmatprep.subr.mxu0 0.0
    %114 = vmatpush1.msra.mxu0 0.0
    %115 = vmatprep.subr.mxu0 0.0
    %116 = vmatpush1.msra.mxu0 0.0
    %117 = vmatprep.subr.mxu0 0.0
    %118 = vmatpush1.msra.mxu0 0.0
    %119 = vmatprep.subr.mxu0 0.0
    %120 = vmatpush1.msra.mxu0 0.0
    %121 = vmatprep.subr.mxu0 0.0
    %122 = vmatpush1.msra.mxu0 0.0
    %123 = vmatprep.subr.mxu0 0.0
    %124 = vmatpush1.msra.mxu0 0.0
    %125 = vmatprep.subr.mxu0 0.0
    %126 = vmatpush1.msra.mxu0 0.0
    %127 = vmatprep.subr.mxu0 0.0
    %128 = vmatpush1.msra.mxu0 0.0
    %129 = vmatprep.subr.mxu0 0.0
    %130 = vmatpush1.msra.mxu0 0.0
    %131 = vmatprep.subr.mxu0 0.0
    %132 = vmatpush1.msra.mxu0 0.0
    %133 = vmatprep.subr.mxu0 0.0
    %134 = vmatpush1.msra.mxu0 0.0
    %135 = vmatprep.subr.mxu0 0.0
    %136 = vmatpush1.msra.mxu0 0.0
    %137 = vmatprep.subr.mxu0 0.0
    %138 = vmatpush1.msra.mxu0 0.0
    %139 = vmatprep.subr.mxu0 0.0
    %140 = vmatpush1.msra.mxu0 0.0
    %141 = vmatprep.subr.mxu0 0.0
    %142 = vmatpush1.msra.mxu0 0.0
    %143 = vmatprep.subr.mxu0 0.0
    %144 = vmatpush1.msra.mxu0 0.0
    %145 = vmatprep.subr.mxu0 0.0
    %146 = vmatpush1.msra.mxu0 0.0
    %147 = vmatprep.subr.mxu0 0.0
    %148 = vmatpush1.msra.mxu0 0.0
    %149 = vmatprep.subr.mxu0 0.0
    %150 = vmatpush1.msra.mxu0 0.0
    %151 = vmatprep.subr.mxu0 0.0
    %152 = vmatpush1.msra.mxu0 0.0
    %153 = vmatprep.subr.mxu0 0.0
    %154 = vmatpush1.msra.mxu0 0.0
    %155 = vmatprep.subr.mxu0 0.0
    %156 = vmatpush1.msra.mxu0 0.0
    %157 = vmatprep.subr.mxu0 0.0
    %158 = vmatpush1.msra.mxu0 0.0
    %159 = vmatprep.subr.mxu0 0.0
    %160 = vmatpush1.msra.mxu0 0.0
    %161 = vmatprep.subr.mxu0 0.0
    %162 = vmatpush1.msra.mxu0 0.0
    %163 = vmatprep.subr.mxu0 0.0
    %164 = vmatpush1.msra.mxu0 0.0
    %165 = vmatprep.mubr.f32.mxu0 0.0
    %166 = vmatmul.mubr.f32.gmra.mrb[0].mxu0 %v90
    %v167 = vpop.f32.mrb[0].mxu0
    %v168 = vadd.f32 0.0, %v167
    %v169 = vpop.f32.mrb[0].mxu0
    %170 = vmatprep.mubr.f32.mxu0 0.0
    %171 = vmatmul.mubr.f32.gmra.mrb[0].mxu0 %v93
    %v172 = vpop.f32.mrb[0].mxu0
    %v173 = vadd.f32 0.0, %v172
    %v174 = vpop.f32.mrb[0].mxu0
    %175 = vmatprep.mubr.f32.mxu0 0.0
    %176 = vmatmul.mubr.f32.gmra.mrb[0].mxu0 %v96
    %v177 = vpop.f32.mrb[0].mxu0
    %v178 = vadd.f32 0.0, %v177
    %v179 = vpop.f32.mrb[0].mxu0
    %180 = vmatprep.mubr.f32.mxu0 0.0
    %181 = vmatmul.mubr.f32.gmra.mrb[0].mxu0 %v99
    %v182 = vpop.f32.mrb[0].mxu0
    %v183 = vadd.f32 0.0, %v182
    %v184 = vpop.f32.mrb[0].mxu0
    %185 = vdwg.mxu0
    %v187 = vsel %vm88, %v168, 0
    %v190 = vsel %vm88, %v173, 0
    %v193 = vsel %vm88, %v178, 0
    %v196 = vsel %vm88, %v183, 0
    %198 = vmatprep.subr.mxu0 0.0
    %199 = vmatpush1.msra.mxu0 %v46
    %200 = vmatprep.subr.mxu0 0.0
    %201 = vmatpush1.msra.mxu0 %v47
    %202 = vmatprep.subr.mxu0 0.0
    %203 = vmatpush1.msra.mxu0 %v48
    %204 = vmatprep.subr.mxu0 0.0
    %205 = vmatpush1.msra.mxu0 %v49
    %206 = vmatprep.subr.mxu0 0.0
    %207 = vmatpush1.msra.mxu0 0.0
    %208 = vmatprep.subr.mxu0 0.0
    %209 = vmatpush1.msra.mxu0 0.0
    %210 = vmatprep.subr.mxu0 0.0
    %211 = vmatpush1.msra.mxu0 0.0
    %212 = vmatprep.subr.mxu0 0.0
    %213 = vmatpush1.msra.mxu0 0.0
    %214 = vmatprep.subr.mxu0 0.0
    %215 = vmatpush1.msra.mxu0 0.0
    %216 = vmatprep.subr.mxu0 0.0
    %217 = vmatpush1.msra.mxu0 0.0
    %218 = vmatprep.subr.mxu0 0.0
    %219 = vmatpush1.msra.mxu0 0.0
    %220 = vmatprep.subr.mxu0 0.0
    %221 = vmatpush1.msra.mxu0 0.0
    %222 = vmatprep.subr.mxu0 0.0
    %223 = vmatpush1.msra.mxu0 0.0
    %224 = vmatprep.subr.mxu0 0.0
    %225 = vmatpush1.msra.mxu0 0.0
    %226 = vmatprep.subr.mxu0 0.0
    %227 = vmatpush1.msra.mxu0 0.0
    %228 = vmatprep.subr.mxu0 0.0
    %229 = vmatpush1.msra.mxu0 0.0
    %230 = vmatprep.subr.mxu0 0.0
    %231 = vmatpush1.msra.mxu0 0.0
    %232 = vmatprep.subr.mxu0 0.0
    %233 = vmatpush1.msra.mxu0 0.0
    %234 = vmatprep.subr.mxu0 0.0
    %235 = vmatpush1.msra.mxu0 0.0
    %236 = vmatprep.subr.mxu0 0.0
    %237 = vmatpush1.msra.mxu0 0.0
    %238 = vmatprep.subr.mxu0 0.0
    %239 = vmatpush1.msra.mxu0 0.0
    %240 = vmatprep.subr.mxu0 0.0
    %241 = vmatpush1.msra.mxu0 0.0
    %242 = vmatprep.subr.mxu0 0.0
    %243 = vmatpush1.msra.mxu0 0.0
    %244 = vmatprep.subr.mxu0 0.0
    %245 = vmatpush1.msra.mxu0 0.0
    %246 = vmatprep.subr.mxu0 0.0
    %247 = vmatpush1.msra.mxu0 0.0
    %248 = vmatprep.subr.mxu0 0.0
    %249 = vmatpush1.msra.mxu0 0.0
    %250 = vmatprep.subr.mxu0 0.0
    %251 = vmatpush1.msra.mxu0 0.0
    %252 = vmatprep.subr.mxu0 0.0
    %253 = vmatpush1.msra.mxu0 0.0
    %254 = vmatprep.subr.mxu0 0.0
    %255 = vmatpush1.msra.mxu0 0.0
    %256 = vmatprep.subr.mxu0 0.0
    %257 = vmatpush1.msra.mxu0 0.0
    %258 = vmatprep.subr.mxu0 0.0
    %259 = vmatpush1.msra.mxu0 0.0
    %260 = vmatprep.subr.mxu0 0.0
    %261 = vmatpush1.msra.mxu0 0.0
    %262 = vmatprep.mubr.f32.mxu0 0.0
    %263 = vmatmul.mubr.f32.gmra.mrb[0].mxu0 %v187
    %v264 = vpop.f32.mrb[0].mxu0
    %v265 = vadd.f32 0.0, %v264
    %v266 = vpop.f32.mrb[0].mxu0
    %267 = vmatprep.mubr.f32.mxu0 0.0
    %268 = vmatmul.mubr.f32.gmra.mrb[0].mxu0 %v190
    %v269 = vpop.f32.mrb[0].mxu0
    %v270 = vadd.f32 0.0, %v269
    %v271 = vpop.f32.mrb[0].mxu0
    %272 = vmatprep.mubr.f32.mxu0 0.0
    %273 = vmatmul.mubr.f32.gmra.mrb[0].mxu0 %v193
    %v274 = vpop.f32.mrb[0].mxu0
    %v275 = vadd.f32 0.0, %v274
    %v276 = vpop.f32.mrb[0].mxu0
    %277 = vmatprep.mubr.f32.mxu0 0.0
    %278 = vmatmul.mubr.f32.gmra.mrb[0].mxu0 %v196
    %v279 = vpop.f32.mrb[0].mxu0
    %v280 = vadd.f32 0.0, %v279
    %v281 = vpop.f32.mrb[0].mxu0
    %282 = vdwg.mxu0
    %v283 = vmax.f32 %v265, 0.0
    %v284 = vmax.f32 %v270, 0.0
    %v285 = vmax.f32 %v275, 0.0
    %v286 = vmax.f32 %v280, 0.0
    %v287 = vadd.f32 %v283, %v284
    %v288 = vrot.slane %v287, 4
    %v289 = vadd.f32 %v287, %v288
    %v290 = vrot.slane %v289, 2
    %v291 = vadd.f32 %v289, %v290
    %v292 = vrot.slane %v291, 1
    %v293 = vadd.f32 %v291, %v292
    %v294 = vadd.f32 %v285, %v286
    %v295 = vrot.slane %v294, 4
    %v296 = vadd.f32 %v294, %v295
    %v297 = vrot.slane %v296, 2
    %v298 = vadd.f32 %v296, %v297
    %v299 = vrot.slane %v298, 1
    %v300 = vadd.f32 %v298, %v299
    %v301 = vrcp.pop 16.0
    %v302 = vmul.f32 %v293, %v301
    %v303 = vmul.f32 %v300, %v301
    %v305 = vsel %vm88, %v38, 0
    %v308 = vsel %vm88, %v39, 0
    %v311 = vsel %vm88, %v40, 0
    %v314 = vsel %vm88, %v41, 0
    %v317 = vsel %vm88, %v42, 0
    %v320 = vsel %vm88, %v43, 0
    %v323 = vsel %vm88, %v44, 0
    %v326 = vsel %vm88, %v45, 0
    %328 = vmatprep.subr.mxu0 0.0
    %329 = vmatpush1.msra.mxu0 %v50
    %330 = vmatprep.subr.mxu0 0.0
    %331 = vmatpush1.msra.mxu0 %v51
    %332 = vmatprep.subr.mxu0 0.0
    %333 = vmatpush1.msra.mxu0 %v52
    %334 = vmatprep.subr.mxu0 0.0
    %335 = vmatpush1.msra.mxu0 %v53
    %336 = vmatprep.subr.mxu0 0.0
    %337 = vmatpush1.msra.mxu0 0.0
    %338 = vmatprep.subr.mxu0 0.0
    %339 = vmatpush1.msra.mxu0 0.0
    %340 = vmatprep.subr.mxu0 0.0
    %341 = vmatpush1.msra.mxu0 0.0
    %342 = vmatprep.subr.mxu0 0.0
    %343 = vmatpush1.msra.mxu0 0.0
    %344 = vmatprep.subr.mxu0 0.0
    %345 = vmatpush1.msra.mxu0 0.0
    %346 = vmatprep.subr.mxu0 0.0
    %347 = vmatpush1.msra.mxu0 0.0
    %348 = vmatprep.subr.mxu0 0.0
    %349 = vmatpush1.msra.mxu0 0.0
    %350 = vmatprep.subr.mxu0 0.0
    %351 = vmatpush1.msra.mxu0 0.0
    %352 = vmatprep.subr.mxu0 0.0
    %353 = vmatpush1.msra.mxu0 0.0
    %354 = vmatprep.subr.mxu0 0.0
    %355 = vmatpush1.msra.mxu0 0.0
    %356 = vmatprep.subr.mxu0 0.0
    %357 = vmatpush1.msra.mxu0 0.0
    %358 = vmatprep.subr.mxu0 0.0
    %359 = vmatpush1.msra.mxu0 0.0
    %360 = vmatprep.subr.mxu0 0.0
    %361 = vmatpush1.msra.mxu0 0.0
    %362 = vmatprep.subr.mxu0 0.0
    %363 = vmatpush1.msra.mxu0 0.0
    %364 = vmatprep.subr.mxu0 0.0
    %365 = vmatpush1.msra.mxu0 0.0
    %366 = vmatprep.subr.mxu0 0.0
    %367 = vmatpush1.msra.mxu0 0.0
    %368 = vmatprep.subr.mxu0 0.0
    %369 = vmatpush1.msra.mxu0 0.0
    %370 = vmatprep.subr.mxu0 0.0
    %371 = vmatpush1.msra.mxu0 0.0
    %372 = vmatprep.subr.mxu0 0.0
    %373 = vmatpush1.msra.mxu0 0.0
    %374 = vmatprep.subr.mxu0 0.0
    %375 = vmatpush1.msra.mxu0 0.0
    %376 = vmatprep.subr.mxu0 0.0
    %377 = vmatpush1.msra.mxu0 0.0
    %378 = vmatprep.subr.mxu0 0.0
    %379 = vmatpush1.msra.mxu0 0.0
    %380 = vmatprep.subr.mxu0 0.0
    %381 = vmatpush1.msra.mxu0 0.0
    %382 = vmatprep.subr.mxu0 0.0
    %383 = vmatpush1.msra.mxu0 0.0
    %384 = vmatprep.subr.mxu0 0.0
    %385 = vmatpush1.msra.mxu0 0.0
    %386 = vmatprep.subr.mxu0 0.0
    %387 = vmatpush1.msra.mxu0 0.0
    %388 = vmatprep.subr.mxu0 0.0
    %389 = vmatpush1.msra.mxu0 0.0
    %390 = vmatprep.subr.mxu0 0.0
    %391 = vmatpush1.msra.mxu0 0.0
    %392 = vmatprep.mubr.f32.mxu0 0.0
    %393 = vmatmul.mubr.f32.gmra.mrb[0].mxu0 %v305
    %v394 = vpop.f32.mrb[0].mxu0
    %v395 = vadd.f32 0.0, %v394
    %v396 = vpop.f32.mrb[0].mxu0
    %397 = vmatprep.mubr.f32.mxu0 0.0
    %398 = vmatmul.mubr.f32.gmra.mrb[0].mxu0 %v308
    %v399 = vpop.f32.mrb[0].mxu0
    %v400 = vadd.f32 0.0, %v399
    %v401 = vpop.f32.mrb[0].mxu0
    %402 = vmatprep.mubr.f32.mxu0 0.0
    %403 = vmatmul.mubr.f32.gmra.mrb[0].mxu0 %v311
    %v404 = vpop.f32.mrb[0].mxu0
    %v405 = vadd.f32 0.0, %v404
    %v406 = vpop.f32.mrb[0].mxu0
    %407 = vmatprep.mubr.f32.mxu0 0.0
    %408 = vmatmul.mubr.f32.gmra.mrb[0].mxu0 %v314
    %v409 = vpop.f32.mrb[0].mxu0
    %v410 = vadd.f32 0.0, %v409
    %v411 = vpop.f32.mrb[0].mxu0
    %412 = vmatprep.mubr.f32.mxu0 0.0
    %413 = vmatmul.mubr.f32.gmra.mrb[0].mxu0 %v317
    %v414 = vpop.f32.mrb[0].mxu0
    %v415 = vadd.f32 0.0, %v414
    %v416 = vpop.f32.mrb[0].mxu0
    %417 = vmatprep.mubr.f32.mxu0 0.0
    %418 = vmatmul.mubr.f32.gmra.mrb[0].mxu0 %v320
    %v419 = vpop.f32.mrb[0].mxu0
    %v420 = vadd.f32 0.0, %v419
    %v421 = vpop.f32.mrb[0].mxu0
    %422 = vmatprep.mubr.f32.mxu0 0.0
    %423 = vmatmul.mubr.f32.gmra.mrb[0].mxu0 %v323
    %v424 = vpop.f32.mrb[0].mxu0
    %v425 = vadd.f32 0.0, %v424
    %v426 = vpop.f32.mrb[0].mxu0
    %427 = vmatprep.mubr.f32.mxu0 0.0
    %428 = vmatmul.mubr.f32.gmra.mrb[0].mxu0 %v326
    %v429 = vpop.f32.mrb[0].mxu0
    %v430 = vadd.f32 0.0, %v429
    %v431 = vpop.f32.mrb[0].mxu0
    %432 = vdwg.mxu0
    %v433 = vmax.f32 %v395, 0.0
    %v434 = vmax.f32 %v400, 0.0
    %v435 = vmax.f32 %v405, 0.0
    %v436 = vmax.f32 %v410, 0.0
    %v437 = vmax.f32 %v415, 0.0
    %v438 = vmax.f32 %v420, 0.0
    %v439 = vmax.f32 %v425, 0.0
    %v440 = vmax.f32 %v430, 0.0
    %v441 = vadd.f32 %v433, %v434
    %v442 = vadd.f32 %v441, %v435
    %v443 = vadd.f32 %v442, %v436
    %v444 = vrot.slane %v443, 4
    %v445 = vadd.f32 %v443, %v444
    %v446 = vrot.slane %v445, 2
    %v447 = vadd.f32 %v445, %v446
    %v448 = vrot.slane %v447, 1
    %v449 = vadd.f32 %v447, %v448
    %v450 = vadd.f32 %v437, %v438
    %v451 = vadd.f32 %v450, %v439
    %v452 = vadd.f32 %v451, %v440
    %v453 = vrot.slane %v452, 4
    %v454 = vadd.f32 %v452, %v453
    %v455 = vrot.slane %v454, 2
    %v456 = vadd.f32 %v454, %v455
    %v457 = vrot.slane %v456, 1
    %v458 = vadd.f32 %v456, %v457
    %v459 = vrcp.pop 32.0
    %v460 = vmul.f32 %v449, %v459
    %v461 = vmul.f32 %v458, %v459
    %vm464 = vcmask 1041409
    %v465 = vsel %vm464, %v303, %v302
    %v469 = vsel %vm464, %v461, %v460
    %v471 = vlaneseq
    %v472 = vshrl.u32 %v471, 7
    %v473 = vsub.s32 0, %v472
    %v474 = vrot.slane %v86, %v473
    %475 = vmatprep.subr.mxu0 0.0
    %476 = vmatpush1.msra.mxu0 %v54
    %477 = vmatprep.subr.mxu0 0.0
    %478 = vmatpush1.msra.mxu0 %v55
    %479 = vmatprep.subr.mxu0 0.0
    %480 = vmatpush1.msra.mxu0 %v56
    %481 = vmatprep.subr.mxu0 0.0
    %482 = vmatpush1.msra.mxu0 %v57
    %483 = vmatprep.subr.mxu0 0.0
    %484 = vmatpush1.msra.mxu0 %v58
    %485 = vmatprep.subr.mxu0 0.0
    %486 = vmatpush1.msra.mxu0 %v59
    %487 = vmatprep.subr.mxu0 0.0
    %488 = vmatpush1.msra.mxu0 %v60
    %489 = vmatprep.subr.mxu0 0.0
    %490 = vmatpush1.msra.mxu0 %v61
    %491 = vmatprep.subr.mxu0 0.0
    %492 = vmatpush1.msra.mxu0 %v62
    %493 = vmatprep.subr.mxu0 0.0
    %494 = vmatpush1.msra.mxu0 %v63
    %495 = vmatprep.subr.mxu0 0.0
    %496 = vmatpush1.msra.mxu0 %v64
    %497 = vmatprep.subr.mxu0 0.0
    %498 = vmatpush1.msra.mxu0 %v65
    %499 = vmatprep.subr.mxu0 0.0
    %500 = vmatpush1.msra.mxu0 %v66
    %501 = vmatprep.subr.mxu0 0.0
    %502 = vmatpush1.msra.mxu0 %v67
    %503 = vmatprep.subr.mxu0 0.0
    %504 = vmatpush1.msra.mxu0 %v68
    %505 = vmatprep.subr.mxu0 0.0
    %506 = vmatpush1.msra.mxu0 %v69
    %507 = vmatprep.subr.mxu0 0.0
    %508 = vmatpush1.msra.mxu0 %v70
    %509 = vmatprep.subr.mxu0 0.0
    %510 = vmatpush1.msra.mxu0 %v71
    %511 = vmatprep.subr.mxu0 0.0
    %512 = vmatpush1.msra.mxu0 %v72
    %513 = vmatprep.subr.mxu0 0.0
    %514 = vmatpush1.msra.mxu0 %v73
    %515 = vmatprep.subr.mxu0 0.0
    %516 = vmatpush1.msra.mxu0 %v74
    %517 = vmatprep.subr.mxu0 0.0
    %518 = vmatpush1.msra.mxu0 %v75
    %519 = vmatprep.subr.mxu0 0.0
    %520 = vmatpush1.msra.mxu0 %v76
    %521 = vmatprep.subr.mxu0 0.0
    %522 = vmatpush1.msra.mxu0 %v77
    %523 = vmatprep.subr.mxu0 0.0
    %524 = vmatpush1.msra.mxu0 %v78
    %525 = vmatprep.subr.mxu0 0.0
    %526 = vmatpush1.msra.mxu0 %v79
    %527 = vmatprep.subr.mxu0 0.0
    %528 = vmatpush1.msra.mxu0 %v80
    %529 = vmatprep.subr.mxu0 0.0
    %530 = vmatpush1.msra.mxu0 %v81
    %531 = vmatprep.subr.mxu0 0.0
    %532 = vmatpush1.msra.mxu0 %v82
    %533 = vmatprep.subr.mxu0 0.0
    %534 = vmatpush1.msra.mxu0 %v83
    %535 = vmatprep.subr.mxu0 0.0
    %536 = vmatpush1.msra.mxu0 %v84
    %537 = vmatprep.subr.mxu0 0.0
    %538 = vmatpush1.msra.mxu0 %v85
    %539 = vmatprep.mubr.f32.mxu0 %v469
    %540 = vmatmul.mubr.f32.gmra.mrb[0].mxu0 %v465
    %v541 = vpop.f32.mrb[0].mxu0
    %v542 = vadd.f32 %v474, %v541
    %v543 = vpop.f32.mrb[0].mxu0
    %544 = vdwg.mxu0
    %v545 = vmax.f32 %v542, 0.0
    %v546 = vlaneseq
    %v547 = vshrl.u32 %v546, 7
    %v548 = vsub.s32 0, %v547
    %v549 = vrot.slane %v87, %v548
    %v550 = vmul.f32 %v545, %v549
    %vm551 = vcmask 1041408
    %v552 = vsel %vm551, %v550, 0.0
    %553 = vadd.xlane.f32.xlu0 %v552
    %v554 = vpop.xlane.xlu0 %553
    %s555 = sld [smem:[#allocation2]]
    %v556 = vstv %s555
    %v557 = vadd.f32 %v554, %v556
    %v558 = vsel %vm551, %v557, 0.0
    %559 = vst [vmem:[#allocation6] sm:$0xff] %v558
    // Predicated region
    $region18: #{tpu_custom_call.1} parent=1 // pred_check
      _
    $region19: #{tpu_custom_call.1} parent=1 // pred_check_branch
      %561 = sbr.rel (0) target = $region21
    $region20: #{tpu_custom_call.1} parent=1 // pred_region
      %s563 = ssub.s32 128, 128
      %564 = vsyncadd [#allocation5], %s563
      %s566 = sshll.u32 [#allocation6], 4
      %s567 = int_to_ptr.vmem [resolvable:$true] %s566
      %569 = dma.vmem_to_hbm [thread:$0]  %s567, 128, %s3, [#allocation5]
    $region21: #{tpu_custom_call.1} parent=1 // pred_fallthru
      _
    // Predicated region
    $region22: #{tpu_custom_call.1} parent=1 // pred_check
      _
    $region23: #{tpu_custom_call.1} parent=1 // pred_check_branch
      %571 = sbr.rel (0) target = $region25
    $region24: #{tpu_custom_call.1} parent=1 // pred_region
      %572 = dma.done [#allocation5], 128
    $region25: #{tpu_custom_call.1} parent=1 // pred_fallthru
      _
    %573 = vsyncpa [#allocation4], 1
    %574 = vsyncpa [#allocation5], 1

</llo_original>
